<compile_context>
chip_gen: v7x
topology: tpu7x:2x2x1
jax: 0.10.0
libtpu: 0.0.40
codegen_flags: <defaults>
</compile_context>

<pallas_src>
import functools
import math

import jax
import jax.numpy as jnp
from jax import lax
from jax.experimental import pallas as pl
from jax.experimental.pallas import tpu as pltpu

# contract the last dim of both operands: x (m,k) . w (n,k) -> (m,n)  == x @ w.T
_DN_RHS_T = (((1,), (1,)), ((), ()))

# Attention matmul operand dtype (accumulation stays f32 via preferred_element_type).
# bf16 operands hit the native MXU path on v5e/v6e/v7x; softmax math stays f32.
_ATTN_MXU_DTYPE = jnp.bfloat16


@functools.lru_cache(maxsize=1)
def _vmem_limit_bytes():
    """Per-generation scoped-VMEM budget (~5/8 of capacity, leaves compiler headroom)."""
    cap = 64 * 1024 * 1024  # conservative fallback (v7x has 64 MiB per TC)
    try:
        info = pltpu.get_tpu_info()
        cap = int(getattr(info, "vmem_capacity_bytes", cap))
    except Exception:
        pass
    return max(32 * 1024 * 1024, cap * 5 // 8)


def _pick_tile(dim, prefs):
    """Largest preferred tile that divides dim, else the full dim (small shapes)."""
    for p in prefs:
        if dim >= p and dim % p == 0:
            return p
    return dim


def _attn_q_tile(B, Sq):
    """Query tile; for tiny batches try to expose >=2 parallel blocks (v7x has 2 TCs)."""
    tq = _pick_tile(Sq, (256, 128))
    if B * (Sq // tq) < 2:
        for cand in (128, 64, 32, 16, 8):
            if Sq % cand == 0 and Sq // cand >= 2:
                return cand
    return tq


# ----------------------------------------------------------------------------
# Tiled linear:  y = x @ w.T + b   (nn.Linear semantics, w is (d_out, d_in))
# ----------------------------------------------------------------------------
def _linear_kernel(x_ref, w_ref, b_ref, o_ref, acc_ref, *, compute_dtype):
    kk = pl.program_id(2)

    @pl.when(kk == 0)
    def _():
        acc_ref[...] = jnp.zeros_like(acc_ref)

    x = x_ref[...]
    w = w_ref[...]
    if compute_dtype is not None:
        # Optional bf16 MXU operands (f32 accumulate) - full MXU rate on v6e/v7x.
        x = x.astype(compute_dtype)
        w = w.astype(compute_dtype)
    acc_ref[...] += lax.dot_general(x, w, _DN_RHS_T,
                                    preferred_element_type=jnp.float32)

    @pl.when(kk == pl.num_programs(2) - 1)
    def _():
        o_ref[...] = (acc_ref[...] + b_ref[...]).astype(o_ref.dtype)


def tiled_linear(x2d, w, b, compute_dtype=None):
    N, d_in = x2d.shape
    d_out = w.shape[0]
    # Big tiles: fewer reduction steps / per-step overhead; ~12 MiB worst case
    # with double buffering, fits v7x's 64 MiB as well as v5e/v6e's 128 MiB.
    tm = _pick_tile(N, (512, 256, 128))
    tn = _pick_tile(d_out, (512, 256, 128))
    tk = _pick_tile(d_in, (1024, 512, 256))
    grid = (N // tm, d_out // tn, d_in // tk)
    kernel = functools.partial(_linear_kernel, compute_dtype=compute_dtype)
    return pl.pallas_call(
        kernel,
        out_shape=jax.ShapeDtypeStruct((N, d_out), x2d.dtype),
        grid=grid,
        in_specs=[
            pl.BlockSpec((tm, tk), lambda i, j, k: (i, k)),
            pl.BlockSpec((tn, tk), lambda i, j, k: (j, k)),
            pl.BlockSpec((1, tn), lambda i, j, k: (0, j)),
        ],
        out_specs=pl.BlockSpec((tm, tn), lambda i, j, k: (i, j)),
        scratch_shapes=[pltpu.VMEM((tm, tn), jnp.float32)],
        compiler_params=pltpu.CompilerParams(
            dimension_semantics=("parallel", "parallel", "arbitrary"),
            vmem_limit_bytes=_vmem_limit_bytes()),
    )(x2d, w, b.reshape(1, d_out))


# ----------------------------------------------------------------------------
# Attention core (weights returned): heads packed on lanes, per-(batch, q-tile)
# grid, full-Sk K/V residency (inherent, since the (H, Sq, Sk) weights must be
# materialized anyway).  q/k/v: (B, S, d_model) -> attn (B,H,Sq,Sk), ctx (B,Sq,d_model)
# ----------------------------------------------------------------------------
def _attn_weights_kernel(q_ref, k_ref, v_ref, attn_ref, ctx_ref,
                         *, num_heads, depth, scale):
    # Fold 1/sqrt(depth) into q (tq*d_model mults instead of H*tq*Sk).
    q = (q_ref[0] * scale).astype(_ATTN_MXU_DTYPE)   # (tq, d_model)
    k = k_ref[0].astype(_ATTN_MXU_DTYPE)             # (Sk, d_model)
    v = v_ref[0].astype(_ATTN_MXU_DTYPE)
    ctx_parts = []
    for h in range(num_heads):    # static head loop; slices stay in VMEM/vregs
        lo = h * depth
        qh = q[:, lo:lo + depth]
        kh = k[:, lo:lo + depth]
        vh = v[:, lo:lo + depth]
        # scores = qh @ kh.T without transposing K (contract last dims), f32 accumulate.
        s = lax.dot_general(qh, kh, _DN_RHS_T, preferred_element_type=jnp.float32)
        s = s - jnp.max(s, axis=-1, keepdims=True)
        p = jnp.exp(s)                                    # softmax math stays f32
        attn = p / jnp.sum(p, axis=-1, keepdims=True)     # EXACT: returned to caller
        attn_ref[0, h] = attn.astype(attn_ref.dtype)      # (tq, Sk) lane-dense store
        ctx_parts.append(
            jnp.dot(attn.astype(_ATTN_MXU_DTYPE), vh,
                    preferred_element_type=jnp.float32))
    # Single lane-dense (tq, d_model) store; heads packed on the last axis.
    ctx_ref[0] = jnp.concatenate(ctx_parts, axis=-1).astype(ctx_ref.dtype)


def attention_core(q, k, v, num_heads, weights_dtype=jnp.float32):
    B, Sq, d_model = q.shape
    Sk = k.shape[1]
    depth = d_model // num_heads
    tq = _attn_q_tile(B, Sq)
    kernel = functools.partial(_attn_weights_kernel, num_heads=num_heads,
                               depth=depth, scale=1.0 / math.sqrt(depth))
    attn, ctx = pl.pallas_call(
        kernel,
        out_shape=(
            jax.ShapeDtypeStruct((B, num_heads, Sq, Sk), weights_dtype),
            jax.ShapeDtypeStruct((B, Sq, d_model), q.dtype),
        ),
        grid=(B, Sq // tq),
        in_specs=[
            pl.BlockSpec((1, tq, d_model), lambda b, qi: (b, qi, 0)),
            # TODO(synk): pipeline_mode=pl.Buffered(1) on K/V (block index constant
            # across qi) would halve their VMEM footprint on v7x; keeping the
            # default double-buffering here for maximum compile compatibility.
            pl.BlockSpec((1, Sk, d_model), lambda b, qi: (b, 0, 0)),
            pl.BlockSpec((1, Sk, d_model), lambda b, qi: (b, 0, 0)),
        ],
        out_specs=(
            pl.BlockSpec((1, num_heads, tq, Sk), lambda b, qi: (b, 0, qi, 0)),
            pl.BlockSpec((1, tq, d_model), lambda b, qi: (b, qi, 0)),
        ),
        compiler_params=pltpu.CompilerParams(
            dimension_semantics=("parallel", "parallel"),
            vmem_limit_bytes=_vmem_limit_bytes()),
    )(q, k, v)
    return attn, ctx


# ----------------------------------------------------------------------------
# Attention core (no weights): KV-tiled online softmax ("flash").  VMEM use is
# independent of Sk; kv grid axis is an "arbitrary" reduction with running
# m/l and an f32 per-head context accumulator in scratch.
# ----------------------------------------------------------------------------
def _flash_attn_kernel(q_ref, k_ref, v_ref, ctx_ref, m_sc, l_sc, acc_sc,
                       *, num_heads, depth, scale):
    ki = pl.program_id(2)

    @pl.when(ki == 0)
    def _():
        m_sc[...] = jnp.full_like(m_sc, -jnp.inf)
        l_sc[...] = jnp.zeros_like(l_sc)
        acc_sc[...] = jnp.zeros_like(acc_sc)

    q = (q_ref[0] * scale).astype(_ATTN_MXU_DTYPE)   # (tq, d_model)
    k = k_ref[0].astype(_ATTN_MXU_DTYPE)             # (tk, d_model)
    v = v_ref[0].astype(_ATTN_MXU_DTYPE)

    for h in range(num_heads):                       # static head loop
        lo = h * depth
        qh = q[:, lo:lo + depth]
        kh = k[:, lo:lo + depth]
        vh = v[:, lo:lo + depth]
        s = lax.dot_general(qh, kh, _DN_RHS_T, preferred_element_type=jnp.float32)
        m_prev = m_sc[h]                                             # (tq, 1)
        m_new = jnp.maximum(m_prev, jnp.max(s, axis=-1, keepdims=True))
        alpha = jnp.exp(m_prev - m_new)                              # rescale factor
        p = jnp.exp(s - m_new)                                       # f32 softmax math
        l_sc[h] = alpha * l_sc[h] + jnp.sum(p, axis=-1, keepdims=True)
        acc_sc[h] = alpha * acc_sc[h] + jnp.dot(
            p.astype(_ATTN_MXU_DTYPE), vh, preferred_element_type=jnp.float32)
        m_sc[h] = m_new

    @pl.when(ki == pl.num_programs(2) - 1)
    def _():
        parts = []
        for h in range(num_heads):
            inv = pl.reciprocal(l_sc[h], approx=True)   # approx OK: context only
            parts.append(acc_sc[h] * inv)
        ctx_ref[0] = jnp.concatenate(parts, axis=-1).astype(ctx_ref.dtype)


def attention_core_flash(q, k, v, num_heads):
    B, Sq, d_model = q.shape
    Sk = k.shape[1]
    depth = d_model // num_heads
    tq = _attn_q_tile(B, Sq)
    tk = _pick_tile(Sk, (512, 256, 128))
    kernel = functools.partial(_flash_attn_kernel, num_heads=num_heads,
                               depth=depth, scale=1.0 / math.sqrt(depth))
    return pl.pallas_call(
        kernel,
        out_shape=jax.ShapeDtypeStruct((B, Sq, d_model), q.dtype),
        grid=(B, Sq // tq, Sk // tk),
        in_specs=[
            pl.BlockSpec((1, tq, d_model), lambda b, qi, ki: (b, qi, 0)),
            pl.BlockSpec((1, tk, d_model), lambda b, qi, ki: (b, ki, 0)),
            pl.BlockSpec((1, tk, d_model), lambda b, qi, ki: (b, ki, 0)),
        ],
        out_specs=pl.BlockSpec((1, tq, d_model), lambda b, qi, ki: (b, qi, 0)),
        scratch_shapes=[
            pltpu.VMEM((num_heads, tq, 1), jnp.float32),       # running max
            pltpu.VMEM((num_heads, tq, 1), jnp.float32),       # running sum
            pltpu.VMEM((num_heads, tq, depth), jnp.float32),   # context accumulator
        ],
        compiler_params=pltpu.CompilerParams(
            dimension_semantics=("parallel", "parallel", "arbitrary"),
            vmem_limit_bytes=_vmem_limit_bytes()),
    )(q, k, v)


# ----------------------------------------------------------------------------
# Module-equivalent forward
# ----------------------------------------------------------------------------
def init_params(key, d_model):
    """Deterministic init of the 4 nn.Linear(d_model, d_model) layers (PyTorch layout)."""
    keys = jax.random.split(key, 8)
    bound = 1.0 / math.sqrt(d_model)

    def lin(kw, kb):
        w = jax.random.uniform(kw, (d_model, d_model), jnp.float32, -bound, bound)
        b = jax.random.uniform(kb, (d_model,), jnp.float32, -bound, bound)
        return w, b

    return {
        "q": lin(keys[0], keys[1]),
        "k": lin(keys[2], keys[3]),
        "v": lin(keys[4], keys[5]),
        "o": lin(keys[6], keys[7]),
    }


def multi_head_attention(params, query, key, value, num_heads, *,
                         need_weights=True, weights_dtype=jnp.float32):
    # TODO(synk): optional `mask` argument / dropout of the PyTorch forward not
    # implemented (mask=None, dropout=0 path only).
    B, Sq, d_model = query.shape
    Sk = key.shape[1]

    xq = query.reshape(B * Sq, d_model)
    xk = key.reshape(B * Sk, d_model)
    xv = value.reshape(B * Sk, d_model)

    wq, bq = params["q"]
    wk, bk = params["k"]
    wv, bv = params["v"]

    if query is key and key is value:
        # Self-attention: single GEMM against the concatenated (3*d_model, d_model)
        # weight; 1x activation DMA instead of 3x, one accumulator, lane-dense slices.
        w_cat = jnp.concatenate([wq, wk, wv], axis=0)
        b_cat = jnp.concatenate([bq, bk, bv], axis=0)
        qkv = tiled_linear(xq, w_cat, b_cat)
        q2 = qkv[:, :d_model]
        k2 = qkv[:, d_model:2 * d_model]
        v2 = qkv[:, 2 * d_model:]
    elif key is value:
        # Cross-attention with a shared K/V source: fuse the K and V GEMMs.
        w_cat = jnp.concatenate([wk, wv], axis=0)
        b_cat = jnp.concatenate([bk, bv], axis=0)
        q2 = tiled_linear(xq, wq, bq)
        kv = tiled_linear(xk, w_cat, b_cat)
        k2, v2 = kv[:, :d_model], kv[:, d_model:]
    else:
        q2 = tiled_linear(xq, wq, bq)
        k2 = tiled_linear(xk, wk, bk)
        v2 = tiled_linear(xv, wv, bv)

    # Heads stay packed on the feature axis - no host-side (0,2,1,3) transposes.
    q = q2.reshape(B, Sq, d_model)
    k = k2.reshape(B, Sk, d_model)
    v = v2.reshape(B, Sk, d_model)

    if need_weights:
        attention, context = attention_core(q, k, v, num_heads, weights_dtype)
    else:
        attention = None
        context = attention_core_flash(q, k, v, num_heads)

    wo, bo = params["o"]
    output = tiled_linear(context.reshape(B * Sq, d_model), wo, bo)
    return output.reshape(B, Sq, d_model), attention


# ----------------------------------------------------------------------------
# Pure-JAX reference (mirrors the PyTorch module) for correctness checks.
# ----------------------------------------------------------------------------
def _reference(params, query, key, value, num_heads):
    B, Sq, d_model = query.shape
    depth = d_model // num_heads

    def lin(x, wb):
        w, b = wb
        return x @ w.T + b

    def split(x):
        b_, s_, _ = x.shape
        return x.reshape(b_, s_, num_heads, depth).transpose(0, 2, 1, 3)

    q = split(lin(query, params["q"]))
    k = split(lin(key, params["k"]))
    v = split(lin(value, params["v"]))
    s = jnp.einsum("bhqd,bhkd->bhqk", q, k) / math.sqrt(depth)
    a = jax.nn.softmax(s, axis=-1)
    c = jnp.einsum("bhqk,bhkd->bhqd", a, v)
    c = c.transpose(0, 2, 1, 3).reshape(B, Sq, d_model)
    return lin(c, params["o"]), a


# ----------------------------------------------------------------------------
if __name__ == "__main__":
    d_model = 32
    num_heads = 4
    B, S = 2, 8

    root = jax.random.PRNGKey(0)
    k_params, k_q, k_k, k_v = jax.random.split(root, 4)

    params = init_params(k_params, d_model)
    query = jax.random.normal(k_q, (B, S, d_model), jnp.float32)
    key = jax.random.normal(k_k, (B, S, d_model), jnp.float32)
    value = jax.random.normal(k_v, (B, S, d_model), jnp.float32)

    # --- cross-attention path (separate GEMMs), attention weights returned ---
    output, attention = multi_head_attention(params, query, key, value, num_heads)
    jax.block_until_ready((output, attention))
    assert output.shape == (B, S, d_model)
    assert attention.shape == (B, num_heads, S, S)
    # exact softmax normalization for the emitted weights -> tight row-sum check
    assert jnp.allclose(attention.sum(-1), 1.0, atol=1e-4)

    ref_out, ref_attn = _reference(params, query, key, value, num_heads)
    assert jnp.allclose(output, ref_out, atol=2e-2, rtol=2e-2)
    assert jnp.allclose(attention, ref_attn, atol=2e-2, rtol=2e-2)

    # --- self-attention path (single concatenated-weight QKV GEMM) ---
    out_self, attn_self = multi_head_attention(params, query, query, query, num_heads)
    jax.block_until_ready((out_self, attn_self))
    ref_out_s, ref_attn_s = _reference(params, query, query, query, num_heads)
    assert jnp.allclose(out_self, ref_out_s, atol=2e-2, rtol=2e-2)
    assert jnp.allclose(attn_self, ref_attn_s, atol=2e-2, rtol=2e-2)

    # --- need_weights=False path (KV-tiled online-softmax kernel) ---
    out_flash, attn_none = multi_head_attention(params, query, key, value, num_heads,
                                                need_weights=False)
    jax.block_until_ready(out_flash)
    assert attn_none is None
    assert jnp.allclose(out_flash, ref_out, atol=2e-2, rtol=2e-2)

    print("KERNEL_OK")
</pallas_src>

<mosaic_0001>
module attributes {stable_mosaic.version = 11 : i64} {
  func.func @_linear_kernel(%arg0: i32, %arg1: i32, %arg2: i32, %arg3: memref<16x32xf32, #tpu.memory_space<vmem>>, %arg4: memref<32x32xf32, #tpu.memory_space<vmem>>, %arg5: memref<1x32xf32, #tpu.memory_space<vmem>>, %arg6: memref<16x32xf32, #tpu.memory_space<vmem>>, %arg7: memref<16x32xf32, #tpu.memory_space<vmem>>) attributes {dimension_semantics = [#tpu.dimension_semantics<parallel>, #tpu.dimension_semantics<parallel>, #tpu.dimension_semantics<arbitrary>], iteration_bounds = array<i64: 1, 1, 1>, scalar_prefetch = 0 : i64, scratch_operands = 1 : i64, tpu.core_type = #tpu.core_type<tc>, window_params = [{transform_indices = @transform_0, window_bounds = array<i64: 16, 32>}, {transform_indices = @transform_1, window_bounds = array<i64: 32, 32>}, {transform_indices = @transform_2, window_bounds = array<i64: 1, 32>}, {transform_indices = @transform_3, window_bounds = array<i64: 16, 32>}]} {
    %c0_i32 = arith.constant 0 : i32
    %0 = arith.cmpi eq, %arg2, %c0_i32 : i32
    %1 = arith.extui %0 : i1 to i32
    %c0_i32_0 = arith.constant 0 : i32
    %2 = arith.cmpi ne, %1, %c0_i32_0 : i32
    scf.if %2 {
      %cst_10 = arith.constant 0.000000e+00 : f32
      %12 = vector.broadcast %cst_10 : f32 to vector<16x32xf32>
      %c0_11 = arith.constant 0 : index
      %c0_12 = arith.constant 0 : index
      %13 = vector.load %arg7[%c0_11, %c0_12] : memref<16x32xf32, #tpu.memory_space<vmem>>, vector<16x32xf32>
      tpu.vector_store %arg7[%c0_11, %c0_12], %12 {strides = array<i32>} : memref<16x32xf32, #tpu.memory_space<vmem>>, vector<16x32xf32>,
    } else {
    }
    %c0 = arith.constant 0 : index
    %c0_1 = arith.constant 0 : index
    %3 = vector.load %arg3[%c0, %c0_1] : memref<16x32xf32, #tpu.memory_space<vmem>>, vector<16x32xf32>
    %c0_2 = arith.constant 0 : index
    %c0_3 = arith.constant 0 : index
    %4 = vector.load %arg4[%c0_2, %c0_3] : memref<32x32xf32, #tpu.memory_space<vmem>>, vector<32x32xf32>
    %c0_4 = arith.constant 0 : index
    %c0_5 = arith.constant 0 : index
    %5 = vector.load %arg7[%c0_4, %c0_5] : memref<16x32xf32, #tpu.memory_space<vmem>>, vector<16x32xf32>
    %cst = arith.constant dense<0.000000e+00> : vector<16x32xf32>
    %6 = tpu.matmul %3, %4, %cst {dimension_numbers = #tpu.dot_dimension_numbers<[1], [1], [0], [0], [0, 0, 1, 0], [], []>} : vector<16x32xf32>, vector<32x32xf32>, vector<16x32xf32> -> vector<16x32xf32>
    %7 = arith.addf %5, %6 : vector<16x32xf32>
    %c0_6 = arith.constant 0 : index
    %c0_7 = arith.constant 0 : index
    %8 = vector.load %arg7[%c0_6, %c0_7] : memref<16x32xf32, #tpu.memory_space<vmem>>, vector<16x32xf32>
    tpu.vector_store %arg7[%c0_6, %c0_7], %7 {strides = array<i32>} : memref<16x32xf32, #tpu.memory_space<vmem>>, vector<16x32xf32>,
    %c0_i32_8 = arith.constant 0 : i32
    %9 = arith.cmpi eq, %arg2, %c0_i32_8 : i32
    %10 = arith.extui %9 : i1 to i32
    %c0_i32_9 = arith.constant 0 : i32
    %11 = arith.cmpi ne, %10, %c0_i32_9 : i32
    scf.if %11 {
      %c0_10 = arith.constant 0 : index
      %c0_11 = arith.constant 0 : index
      %12 = vector.load %arg7[%c0_10, %c0_11] : memref<16x32xf32, #tpu.memory_space<vmem>>, vector<16x32xf32>
      %c0_12 = arith.constant 0 : index
      %c0_13 = arith.constant 0 : index
      %13 = vector.load %arg5[%c0_12, %c0_13] : memref<1x32xf32, #tpu.memory_space<vmem>>, vector<1x32xf32>
      %14 = vector.broadcast %13 : vector<1x32xf32> to vector<16x32xf32>
      %15 = arith.addf %12, %14 : vector<16x32xf32>
      %c0_14 = arith.constant 0 : index
      %c0_15 = arith.constant 0 : index
      %16 = vector.load %arg6[%c0_14, %c0_15] : memref<16x32xf32, #tpu.memory_space<vmem>>, vector<16x32xf32>
      tpu.vector_store %arg6[%c0_14, %c0_15], %15 {strides = array<i32>} : memref<16x32xf32, #tpu.memory_space<vmem>>, vector<16x32xf32>,
    } else {
    }
    return
  }
  func.func @transform_0(%arg0: i32, %arg1: i32, %arg2: i32) -> (i32, i32) {
    %c0_i32 = arith.constant 0 : i32
    return %arg0, %arg2 : i32, i32
  }
  func.func @transform_1(%arg0: i32, %arg1: i32, %arg2: i32) -> (i32, i32) {
    %c0_i32 = arith.constant 0 : i32
    return %arg1, %arg2 : i32, i32
  }
  func.func @transform_2(%arg0: i32, %arg1: i32, %arg2: i32) -> (i32, i32) {
    %c0_i32 = arith.constant 0 : i32
    %c0_i32_0 = arith.constant 0 : i32
    return %c0_i32, %arg1 : i32, i32
  }
  func.func @transform_3(%arg0: i32, %arg1: i32, %arg2: i32) -> (i32, i32) {
    %c0_i32 = arith.constant 0 : i32
    return %arg0, %arg1 : i32, i32
  }
}

</mosaic_0001>

<llo_original>
// kernel: tpu_custom_call.1
$region0: #{tpu_custom_call.1}
  #allocation0 [shape = 'u32[]', space=smem, size = 0x4, offset = 0x4, fixed_abs, tag = 'smem constant byte address 0x4 - core index']
  #allocation1 [shape = 'u32[144,128]{1,0:T(1,128)}', space=vmem, size = 0x12000, scoped, tag = 'internal scratch']
  #allocation2 [shape = 'f32[16,32]{1,0:T(8,128)}', space=vmem, size = 0x2000, scoped, tag = 'scratch operand']
  %s0 = inlined_call_operand.hbm [shape: f32[16,32], index: 0, kind: input, shape index: {}]
  %s1 = inlined_call_operand.hbm [shape: f32[32,32], index: 1, kind: input, shape index: {}]
  %s2 = inlined_call_operand.vmem [shape: f32[1,32], index: 2, kind: input, shape index: {}]
  %s3 = inlined_call_operand.hbm [shape: f32[16,32], index: 3, kind: output, shape index: {}]
  %s4 = sld [smem:[#allocation0]]
  $region38: #{tpu_custom_call.1} parent=0
    _
  %s6 = ssub.s32 1, %s4
  %s7 = scalar_select 0, %s6, %s4
  $region1: #{tpu_custom_call.1} parent=0
    #allocation3 [shape = 'u8[8192]{0}', space=vmem, size = 0x2000, scoped, tag = 'input window, operand 0, single buffered']
    #allocation4 [shape = 's32[1]{0}', space=sflag, size = 0x4, scoped, tag = 'scoped memory for tpu_custom_call.1']
    #allocation5 [shape = 's32[1]{0}', space=sflag, size = 0x4, scoped, tag = 'scoped memory for tpu_custom_call.1']
    #allocation6 [shape = 'u8[16384]{0}', space=vmem, size = 0x4000, scoped, tag = 'input window, operand 1, single buffered']
    #allocation7 [shape = 's32[1]{0}', space=sflag, size = 0x4, scoped, tag = 'scoped memory for tpu_custom_call.1']
    #allocation8 [shape = 'u8[8192]{0}', space=vmem, size = 0x2000, scoped, tag = 'output window, operand 0, single buffered']
    %8 = vsyncpa [#allocation4], 0
    %9 = vsyncpa [#allocation7], 0
    %10 = vsyncpa [#allocation5], 0
    // Predicated region
    $region2: #{tpu_custom_call.1} parent=1 // pred_check
      _
    $region3: #{tpu_custom_call.1} parent=1 // pred_check_branch
      %12 = sbr.rel (0) target = $region5
    $region4: #{tpu_custom_call.1} parent=1 // pred_region
      %s14 = ssub.s32 256, 256
      %15 = vsyncadd [#allocation4], %s14
      %s16 = sshll.u32 [#allocation3], 4
      %s17 = int_to_ptr.vmem [resolvable:$true] %s16
      %22 = dma.hbm_to_vmem [thread:$0]  %s0, 256, %s17, [#allocation4], 128, 128, 8
    $region5: #{tpu_custom_call.1} parent=1 // pred_fallthru
      _
    // Predicated region
    $region6: #{tpu_custom_call.1} parent=1 // pred_check
      _
    $region7: #{tpu_custom_call.1} parent=1 // pred_check_branch
      %24 = sbr.rel (0) target = $region9
    $region8: #{tpu_custom_call.1} parent=1 // pred_region
      %s26 = ssub.s32 512, 512
      %27 = vsyncadd [#allocation7], %s26
      %s28 = sshll.u32 [#allocation6], 4
      %s29 = int_to_ptr.vmem [resolvable:$true] %s28
      %34 = dma.hbm_to_vmem [thread:$0]  %s1, 512, %s29, [#allocation7], 128, 128, 8
    $region9: #{tpu_custom_call.1} parent=1 // pred_fallthru
      _
    // Predicated region
    $region10: #{tpu_custom_call.1} parent=1 // pred_check
      _
    $region11: #{tpu_custom_call.1} parent=1 // pred_check_branch
      %36 = sbr.rel (0) target = $region13
    $region12: #{tpu_custom_call.1} parent=1 // pred_region
      _
    $region13: #{tpu_custom_call.1} parent=1 // pred_fallthru
      _
    // Predicated region
    $region14: #{tpu_custom_call.1} parent=1 // pred_check
      _
    $region15: #{tpu_custom_call.1} parent=1 // pred_check_branch
      %38 = sbr.rel (0) target = $region17
    $region16: #{tpu_custom_call.1} parent=1 // pred_region
      %39 = dma.done [#allocation4], 256
    $region17: #{tpu_custom_call.1} parent=1 // pred_fallthru
      _
    // Predicated region
    $region18: #{tpu_custom_call.1} parent=1 // pred_check
      _
    $region19: #{tpu_custom_call.1} parent=1 // pred_check_branch
      %41 = sbr.rel (0) target = $region21
    $region20: #{tpu_custom_call.1} parent=1 // pred_region
      %42 = dma.done [#allocation7], 512
    $region21: #{tpu_custom_call.1} parent=1 // pred_fallthru
      _
    %p43 = scmp.eq.s32.totalorder 0, 0
    // Predicated region
    $region22: #{tpu_custom_call.1} parent=1 // pred_check
      %p44 = pneg %p43
    $region23: #{tpu_custom_call.1} parent=1 // pred_check_branch
      %46 = sbr.rel (%p44) target = $region25
    $region24: #{tpu_custom_call.1} parent=1 // pred_region
      %vm47 = vcmask 261120
      %48 = vst.msk [vmem:[#allocation2] sm:$0xff] %vm47, 0.0
      %49 = vst.msk [vmem:[#allocation2 + $0x8] sm:$0xff] %vm47, 0.0
    $region25: #{tpu_custom_call.1} parent=1 // pred_fallthru
      _
    %v50 = vld [vmem:[#allocation3] sm:$0xff]
    %v51 = vld [vmem:[#allocation3 + $0x8] sm:$0xff]
    %v52 = vld [vmem:[#allocation6] sm:$0xff]
    %v53 = vld [vmem:[#allocation6 + $0x8] sm:$0xff]
    %v54 = vld [vmem:[#allocation6 + $0x10] sm:$0xff]
    %v55 = vld [vmem:[#allocation6 + $0x18] sm:$0xff]
    %v56 = vld [vmem:[#allocation2] sm:$0xff]
    %v57 = vld [vmem:[#allocation2 + $0x8] sm:$0xff]
    %vm58 = vcmask 261120
    %v60 = vsel %vm58, %v50, 0
    %v63 = vsel %vm58, %v51, 0
    %v66 = vsel %vm58, %v52, 0
    %v69 = vsel %vm58, %v53, 0
    %v72 = vsel %vm58, %v54, 0
    %v75 = vsel %vm58, %v55, 0
    %77 = vmatprep.subr.mxu0 0.0
    %78 = vmatpush1.xpose.msra.mxu0 %v66
    %79 = vmatprep.subr.mxu0 0.0
    %80 = vmatpush1.xpose.msra.mxu0 %v69
    %81 = vmatprep.subr.mxu0 0.0
    %82 = vmatpush1.xpose.msra.mxu0 %v72
    %83 = vmatprep.subr.mxu0 0.0
    %84 = vmatpush1.xpose.msra.mxu0 %v75
    %85 = vmatprep.subr.mxu0 0.0
    %86 = vmatpush1.xpose.msra.mxu0 0.0
    %87 = vmatprep.subr.mxu0 0.0
    %88 = vmatpush1.xpose.msra.mxu0 0.0
    %89 = vmatprep.subr.mxu0 0.0
    %90 = vmatpush1.xpose.msra.mxu0 0.0
    %91 = vmatprep.subr.mxu0 0.0
    %92 = vmatpush1.xpose.msra.mxu0 0.0
    %93 = vmatprep.subr.mxu0 0.0
    %94 = vmatpush1.xpose.msra.mxu0 0.0
    %95 = vmatprep.subr.mxu0 0.0
    %96 = vmatpush1.xpose.msra.mxu0 0.0
    %97 = vmatprep.subr.mxu0 0.0
    %98 = vmatpush1.xpose.msra.mxu0 0.0
    %99 = vmatprep.subr.mxu0 0.0
    %100 = vmatpush1.xpose.msra.mxu0 0.0
    %101 = vmatprep.subr.mxu0 0.0
    %102 = vmatpush1.xpose.msra.mxu0 0.0
    %103 = vmatprep.subr.mxu0 0.0
    %104 = vmatpush1.xpose.msra.mxu0 0.0
    %105 = vmatprep.subr.mxu0 0.0
    %106 = vmatpush1.xpose.msra.mxu0 0.0
    %107 = vmatprep.subr.mxu0 0.0
    %108 = vmatpush1.xpose.msra.mxu0 0.0
    %109 = vmatprep.subr.mxu0 0.0
    %110 = vmatpush1.xpose.msra.mxu0 0.0
    %111 = vmatprep.subr.mxu0 0.0
    %112 = vmatpush1.xpose.msra.mxu0 0.0
    %113 = vmatprep.subr.mxu0 0.0
    %114 = vmatpush1.xpose.msra.mxu0 0.0
    %115 = vmatprep.subr.mxu0 0.0
    %116 = vmatpush1.xpose.msra.mxu0 0.0
    %117 = vmatprep.subr.mxu0 0.0
    %118 = vmatpush1.xpose.msra.mxu0 0.0
    %119 = vmatprep.subr.mxu0 0.0
    %120 = vmatpush1.xpose.msra.mxu0 0.0
    %121 = vmatprep.subr.mxu0 0.0
    %122 = vmatpush1.xpose.msra.mxu0 0.0
    %123 = vmatprep.subr.mxu0 0.0
    %124 = vmatpush1.xpose.msra.mxu0 0.0
    %125 = vmatprep.subr.mxu0 0.0
    %126 = vmatpush1.xpose.msra.mxu0 0.0
    %127 = vmatprep.subr.mxu0 0.0
    %128 = vmatpush1.xpose.msra.mxu0 0.0
    %129 = vmatprep.subr.mxu0 0.0
    %130 = vmatpush1.xpose.msra.mxu0 0.0
    %131 = vmatprep.subr.mxu0 0.0
    %132 = vmatpush1.xpose.msra.mxu0 0.0
    %133 = vmatprep.subr.mxu0 0.0
    %134 = vmatpush1.xpose.msra.mxu0 0.0
    %135 = vmatprep.subr.mxu0 0.0
    %136 = vmatpush1.xpose.msra.mxu0 0.0
    %137 = vmatprep.subr.mxu0 0.0
    %138 = vmatpush1.xpose.msra.mxu0 0.0
    %139 = vmatprep.subr.mxu0 0.0
    %140 = vmatpush1.xpose.msra.mxu0 0.0
    %141 = vmatprep.mubr.f32.mxu0 0.0
    %142 = vmatmul.mubr.f32.gmra.mrb[0].mxu0 %v60
    %v143 = vpop.f32.mrb[0].mxu0
    %v144 = vadd.f32 0.0, %v143
    %v145 = vpop.f32.mrb[0].mxu0
    %146 = vmatprep.mubr.f32.mxu0 0.0
    %147 = vmatmul.mubr.f32.gmra.mrb[0].mxu0 %v63
    %v148 = vpop.f32.mrb[0].mxu0
    %v149 = vadd.f32 0.0, %v148
    %v150 = vpop.f32.mrb[0].mxu0
    %151 = vdwg.mxu0
    %v152 = vadd.f32 %v56, %v144
    %v153 = vadd.f32 %v57, %v149
    %154 = vst.msk [vmem:[#allocation2] sm:$0xff] %vm58, %v152
    %155 = vst.msk [vmem:[#allocation2 + $0x8] sm:$0xff] %vm58, %v153
    // Predicated region
    $region26: #{tpu_custom_call.1} parent=1 // pred_check
      %p156 = pneg %p43
    $region27: #{tpu_custom_call.1} parent=1 // pred_check_branch
      %158 = sbr.rel (%p156) target = $region29
    $region28: #{tpu_custom_call.1} parent=1 // pred_region
      %v159 = vld [vmem:[#allocation2] sm:$0xff]
      %v160 = vld [vmem:[#allocation2 + $0x8] sm:$0xff]
      %v161 = vld [vmem:[%s2] sm:$0x1]
      %v163 = vlaneseq
      %v164 = vshrl.u32 %v163, 7
      %v165 = vsub.s32 0, %v164
      %v166 = vrot.slane %v161, %v165
      %v168 = vadd.f32 %v159, %v166
      %v169 = vadd.f32 %v160, %v166
      %170 = vst.msk [vmem:[#allocation8] sm:$0xff] %vm58, %v168
      %171 = vst.msk [vmem:[#allocation8 + $0x8] sm:$0xff] %vm58, %v169
    $region29: #{tpu_custom_call.1} parent=1 // pred_fallthru
      _
    // Predicated region
    $region30: #{tpu_custom_call.1} parent=1 // pred_check
      _
    $region31: #{tpu_custom_call.1} parent=1 // pred_check_branch
      %173 = sbr.rel (0) target = $region33
    $region32: #{tpu_custom_call.1} parent=1 // pred_region
      %s175 = ssub.s32 256, 256
      %176 = vsyncadd [#allocation5], %s175
      %s177 = sshll.u32 [#allocation8], 4
      %s178 = int_to_ptr.vmem [resolvable:$true] %s177
      %183 = dma.vmem_to_hbm [thread:$0]  %s178, 256, %s3, [#allocation5], 128, 128, 8
    $region33: #{tpu_custom_call.1} parent=1 // pred_fallthru
      _
    // Predicated region
    $region34: #{tpu_custom_call.1} parent=1 // pred_check
      _
    $region35: #{tpu_custom_call.1} parent=1 // pred_check_branch
      %185 = sbr.rel (0) target = $region37
    $region36: #{tpu_custom_call.1} parent=1 // pred_region
      %186 = dma.done [#allocation5], 256
    $region37: #{tpu_custom_call.1} parent=1 // pred_fallthru
      _
    %187 = vsyncpa [#allocation4], 1
    %188 = vsyncpa [#allocation7], 1
    %189 = vsyncpa [#allocation5], 1

</llo_original>
